<compile_context>
chip_gen: v7x
topology: tpu7x:2x2x1
jax: 0.10.0
libtpu: 0.0.40
codegen_flags: <defaults>
</compile_context>

<pallas_src>
import jax
import jax.numpy as jnp
from jax.experimental import pallas as pl
from jax.experimental.pallas import tpu as pltpu


def _mlp_kernel(x_ref, w1t_ref, b1_ref, w2t_ref, b2_ref, o_ref):
    # x_ref:   (seq_len, TN)      -- rows of the original problem live on lanes
    # w1t_ref: (hidden, seq_len)   b1_ref: (hidden, 1)
    # w2t_ref: (pred_len, hidden)  b2_ref: (pred_len, 1)
    # o_ref:   (pred_len, TN)

    # l1: W1^T @ X^T + b1   (MXU matmul, f32 accumulate)
    h = jnp.dot(w1t_ref[...], x_ref[...], preferred_element_type=jnp.float32)
    h = h + b1_ref[...].astype(jnp.float32)

    # exact GELU (matches torch.nn.GELU default): 0.5 * h * (1 + erf(h / sqrt(2)))
    h = 0.5 * h * (1.0 + jax.lax.erf(h * jnp.float32(0.7071067811865476)))

    # l2: W2^T @ H + b2
    o = jnp.dot(w2t_ref[...], h.astype(w2t_ref.dtype),
                preferred_element_type=jnp.float32)
    o = o + b2_ref[...].astype(jnp.float32)
    o_ref[...] = o.astype(o_ref.dtype)


def _round_up(x, m):
    return (x + m - 1) // m * m


def mlp_layer(x, w1, b1, w2, b2, *, tn_max=2048):
    """x: (..., seq_len). w1: (seq_len, hidden), w2: (hidden, pred_len).
    Returns (..., pred_len)."""
    seq_len = x.shape[-1]
    hidden = w1.shape[1]
    pred_len = w2.shape[1]
    lead = x.shape[:-1]
    n_rows = 1
    for d in lead:
        n_rows *= d

    # --- lane-dense layout: rows go on the last (lane) axis -----------------
    xt = x.reshape(n_rows, seq_len).T                      # (seq_len, N)

    # Row-tile size: large multiple of 128 (amortizes ~0.35us/step pipeline
    # overhead), capped so double-buffered x/out tiles stay well inside the
    # 32 MiB scoped-VMEM default on every TPU generation (incl. v7x's 64 MiB).
    tn = min(tn_max, _round_up(n_rows, 128))
    n_pad = _round_up(n_rows, tn)
    if n_pad != n_rows:
        xt = jnp.pad(xt, ((0, 0), (0, n_pad - n_rows)))    # zero-pad extra cols

    w1t = w1.T                                             # (hidden, seq_len)
    w2t = w2.T                                             # (pred_len, hidden)
    b1c = b1.reshape(hidden, 1)
    b2c = b2.reshape(pred_len, 1)

    grid = (n_pad // tn,)

    itemsize = jnp.dtype(x.dtype).itemsize
    cost = pl.CostEstimate(
        flops=2 * n_rows * (seq_len * hidden + hidden * pred_len),
        transcendentals=n_rows * hidden,
        bytes_accessed=itemsize * (n_rows * (seq_len + pred_len)
                                   + seq_len * hidden + hidden * pred_len
                                   + hidden + pred_len),
    )

    out_t = pl.pallas_call(
        _mlp_kernel,
        out_shape=jax.ShapeDtypeStruct((pred_len, n_pad), x.dtype),
        grid=grid,
        in_specs=[
            # x tile slides along the (lane) row axis; double-buffered by Pallas.
            pl.BlockSpec((seq_len, tn), lambda i: (0, i)),
            # weights / biases: VMEM-resident across all grid steps.
            pl.BlockSpec((hidden, seq_len), lambda i: (0, 0)),
            pl.BlockSpec((hidden, 1), lambda i: (0, 0)),
            pl.BlockSpec((pred_len, hidden), lambda i: (0, 0)),
            pl.BlockSpec((pred_len, 1), lambda i: (0, 0)),
        ],
        out_specs=pl.BlockSpec((pred_len, tn), lambda i: (0, i)),
        compiler_params=pltpu.CompilerParams(
            # "parallel" lets v7x shard row tiles across its two TensorCores.
            dimension_semantics=("parallel",),
        ),
        cost_estimate=cost,
    )(xt, w1t, b1c, w2t, b2c)

    # Strip padding, transpose back to rows-major, restore leading dims.
    return out_t[:, :n_rows].T.reshape(*lead, pred_len)


if __name__ == "__main__":
    # Module hyperparameters (small, consistent with the forward pass)
    seq_len, pred_len, hidden_size = 8, 8, 32
    batch, channels = 2, 4

    key = jax.random.PRNGKey(0)
    kx, kw1, kb1, kw2, kb2 = jax.random.split(key, 5)

    # Deterministic parameter init (PyTorch Linear-style uniform bounds).
    bound1 = 1.0 / (seq_len ** 0.5)
    bound2 = 1.0 / (hidden_size ** 0.5)
    # Stored pre-transposed: (in_features, out_features)
    w1 = jax.random.uniform(kw1, (seq_len, hidden_size), jnp.float32, -bound1, bound1)
    b1 = jax.random.uniform(kb1, (hidden_size,), jnp.float32, -bound1, bound1)
    w2 = jax.random.uniform(kw2, (hidden_size, pred_len), jnp.float32, -bound2, bound2)
    b2 = jax.random.uniform(kb2, (pred_len,), jnp.float32, -bound2, bound2)

    # Input: (batch, channels, seq_len) — Linear acts on the last axis.
    x = jax.random.normal(kx, (batch, channels, seq_len), jnp.float32)

    out = mlp_layer(x, w1, b1, w2, b2)
    out = jax.block_until_ready(out)

    # Pure-JAX reference check (exact-erf GELU, same as torch.nn.GELU default).
    h_ref = x @ w1 + b1
    h_ref = 0.5 * h_ref * (1.0 + jax.lax.erf(h_ref / jnp.sqrt(2.0)))
    ref = h_ref @ w2 + b2
    assert out.shape == (batch, channels, pred_len)
    assert jnp.allclose(out, ref, atol=1e-5, rtol=1e-5)

    print("KERNEL_OK")
</pallas_src>

<mosaic_0001>
module attributes {stable_mosaic.version = 11 : i64} {
  func.func @_mlp_kernel(%arg0: i32, %arg1: memref<8x128xf32, #tpu.memory_space<vmem>>, %arg2: memref<32x8xf32, #tpu.memory_space<vmem>>, %arg3: memref<32x1xf32, #tpu.memory_space<vmem>>, %arg4: memref<8x32xf32, #tpu.memory_space<vmem>>, %arg5: memref<8x1xf32, #tpu.memory_space<vmem>>, %arg6: memref<8x128xf32, #tpu.memory_space<vmem>>) attributes {dimension_semantics = [#tpu.dimension_semantics<parallel>], iteration_bounds = array<i64: 1>, scalar_prefetch = 0 : i64, scratch_operands = 0 : i64, tpu.core_type = #tpu.core_type<tc>, window_params = [{transform_indices = @transform_0, window_bounds = array<i64: 8, 128>}, {pipeline_mode = #tpu.pipeline_mode<synchronous>, transform_indices = @transform_1, window_bounds = array<i64: 32, 8>}, {pipeline_mode = #tpu.pipeline_mode<synchronous>, transform_indices = @transform_2, window_bounds = array<i64: 32, 1>}, {pipeline_mode = #tpu.pipeline_mode<synchronous>, transform_indices = @transform_3, window_bounds = array<i64: 8, 32>}, {pipeline_mode = #tpu.pipeline_mode<synchronous>, transform_indices = @transform_4, window_bounds = array<i64: 8, 1>}, {transform_indices = @transform_5, window_bounds = array<i64: 8, 128>}]} {
    %c0 = arith.constant 0 : index
    %c0_0 = arith.constant 0 : index
    %0 = vector.load %arg2[%c0, %c0_0] : memref<32x8xf32, #tpu.memory_space<vmem>>, vector<32x8xf32>
    %c0_1 = arith.constant 0 : index
    %c0_2 = arith.constant 0 : index
    %1 = vector.load %arg1[%c0_1, %c0_2] : memref<8x128xf32, #tpu.memory_space<vmem>>, vector<8x128xf32>
    %cst = arith.constant dense<0.000000e+00> : vector<32x128xf32>
    %2 = tpu.matmul %0, %1, %cst {dimension_numbers = #tpu.dot_dimension_numbers<[1], [0], [0], [1], [0, 0, 1, 1], [], []>} : vector<32x8xf32>, vector<8x128xf32>, vector<32x128xf32> -> vector<32x128xf32>
    %c0_3 = arith.constant 0 : index
    %c0_4 = arith.constant 0 : index
    %3 = vector.load %arg3[%c0_3, %c0_4] : memref<32x1xf32, #tpu.memory_space<vmem>>, vector<32x1xf32>
    %4 = vector.broadcast %3 : vector<32x1xf32> to vector<32x128xf32>
    %5 = arith.addf %2, %4 : vector<32x128xf32>
    %cst_5 = arith.constant 5.000000e-01 : f32
    %6 = vector.broadcast %cst_5 : f32 to vector<32x128xf32>
    %7 = arith.mulf %6, %5 : vector<32x128xf32>
    %cst_6 = arith.constant 0.707106769 : f32
    %8 = vector.broadcast %cst_6 : f32 to vector<32x128xf32>
    %9 = arith.mulf %5, %8 : vector<32x128xf32>
    %10 = math.erf %9 : vector<32x128xf32>
    %cst_7 = arith.constant 1.000000e+00 : f32
    %11 = vector.broadcast %cst_7 : f32 to vector<32x128xf32>
    %12 = arith.addf %11, %10 : vector<32x128xf32>
    %13 = arith.mulf %7, %12 : vector<32x128xf32>
    %c0_8 = arith.constant 0 : index
    %c0_9 = arith.constant 0 : index
    %14 = vector.load %arg4[%c0_8, %c0_9] : memref<8x32xf32, #tpu.memory_space<vmem>>, vector<8x32xf32>
    %cst_10 = arith.constant dense<0.000000e+00> : vector<8x128xf32>
    %15 = tpu.matmul %14, %13, %cst_10 {dimension_numbers = #tpu.dot_dimension_numbers<[1], [0], [0], [1], [0, 0, 1, 1], [], []>} : vector<8x32xf32>, vector<32x128xf32>, vector<8x128xf32> -> vector<8x128xf32>
    %c0_11 = arith.constant 0 : index
    %c0_12 = arith.constant 0 : index
    %16 = vector.load %arg5[%c0_11, %c0_12] : memref<8x1xf32, #tpu.memory_space<vmem>>, vector<8x1xf32>
    %17 = vector.broadcast %16 : vector<8x1xf32> to vector<8x128xf32>
    %18 = arith.addf %15, %17 : vector<8x128xf32>
    %c0_13 = arith.constant 0 : index
    %c0_14 = arith.constant 0 : index
    %19 = vector.load %arg6[%c0_13, %c0_14] : memref<8x128xf32, #tpu.memory_space<vmem>>, vector<8x128xf32>
    tpu.vector_store %arg6[%c0_13, %c0_14], %18 {strides = array<i32>} : memref<8x128xf32, #tpu.memory_space<vmem>>, vector<8x128xf32>,
    return
  }
  func.func @transform_0(%arg0: i32) -> (i32, i32) {
    %c0_i32 = arith.constant 0 : i32
    %c0_i32_0 = arith.constant 0 : i32
    return %c0_i32, %arg0 : i32, i32
  }
  func.func @transform_1(%arg0: i32) -> (i32, i32) {
    %c0_i32 = arith.constant 0 : i32
    %c0_i32_0 = arith.constant 0 : i32
    %c0_i32_1 = arith.constant 0 : i32
    return %c0_i32, %c0_i32_0 : i32, i32
  }
  func.func @transform_2(%arg0: i32) -> (i32, i32) {
    %c0_i32 = arith.constant 0 : i32
    %c0_i32_0 = arith.constant 0 : i32
    %c0_i32_1 = arith.constant 0 : i32
    return %c0_i32, %c0_i32_0 : i32, i32
  }
  func.func @transform_3(%arg0: i32) -> (i32, i32) {
    %c0_i32 = arith.constant 0 : i32
    %c0_i32_0 = arith.constant 0 : i32
    %c0_i32_1 = arith.constant 0 : i32
    return %c0_i32, %c0_i32_0 : i32, i32
  }
  func.func @transform_4(%arg0: i32) -> (i32, i32) {
    %c0_i32 = arith.constant 0 : i32
    %c0_i32_0 = arith.constant 0 : i32
    %c0_i32_1 = arith.constant 0 : i32
    return %c0_i32, %c0_i32_0 : i32, i32
  }
  func.func @transform_5(%arg0: i32) -> (i32, i32) {
    %c0_i32 = arith.constant 0 : i32
    %c0_i32_0 = arith.constant 0 : i32
    return %c0_i32, %arg0 : i32, i32
  }
}

</mosaic_0001>

<llo_original>
// kernel: tpu_custom_call.1
$region0: #{tpu_custom_call.1}
  #allocation0 [shape = 'u32[]', space=smem, size = 0x4, offset = 0x4, fixed_abs, tag = 'smem constant byte address 0x4 - core index']
  #allocation1 [shape = 'u32[144,128]{1,0:T(1,128)}', space=vmem, size = 0x12000, scoped, tag = 'internal scratch']
  %s0 = inlined_call_operand.vmem [shape: f32[8,128], index: 0, kind: input, shape index: {}]
  %s1 = inlined_call_operand.vmem [shape: f32[32,8], index: 1, kind: input, shape index: {}]
  %s2 = inlined_call_operand.vmem [shape: f32[32,1], index: 2, kind: input, shape index: {}]
  %s3 = inlined_call_operand.vmem [shape: f32[8,32], index: 3, kind: input, shape index: {}]
  %s4 = inlined_call_operand.vmem [shape: f32[8,1], index: 4, kind: input, shape index: {}]
  %s5 = inlined_call_operand.hbm [shape: f32[8,128], index: 5, kind: output, shape index: {}]
  %s6 = sld [smem:[#allocation0]]
  $region30: #{tpu_custom_call.1} parent=0
    _
  %s8 = ssub.s32 1, %s6
  %s9 = scalar_select 0, %s8, %s6
  $region1: #{tpu_custom_call.1} parent=0
    #allocation2 [shape = 'u8[4096]{0}', space=vmem, size = 0x1000, scoped, tag = 'output window, operand 0, single buffered']
    #allocation3 [shape = 's32[1]{0}', space=sflag, size = 0x4, scoped, tag = 'scoped memory for tpu_custom_call.1']
    %10 = vsyncpa [#allocation3], 0
    // Predicated region
    $region2: #{tpu_custom_call.1} parent=1 // pred_check
      _
    $region3: #{tpu_custom_call.1} parent=1 // pred_check_branch
      %12 = sbr.rel (0) target = $region5
    $region4: #{tpu_custom_call.1} parent=1 // pred_region
      _
    $region5: #{tpu_custom_call.1} parent=1 // pred_fallthru
      _
    // Predicated region
    $region6: #{tpu_custom_call.1} parent=1 // pred_check
      _
    $region7: #{tpu_custom_call.1} parent=1 // pred_check_branch
      %14 = sbr.rel (0) target = $region9
    $region8: #{tpu_custom_call.1} parent=1 // pred_region
      _
    $region9: #{tpu_custom_call.1} parent=1 // pred_fallthru
      _
    // Predicated region
    $region10: #{tpu_custom_call.1} parent=1 // pred_check
      _
    $region11: #{tpu_custom_call.1} parent=1 // pred_check_branch
      %16 = sbr.rel (0) target = $region13
    $region12: #{tpu_custom_call.1} parent=1 // pred_region
      _
    $region13: #{tpu_custom_call.1} parent=1 // pred_fallthru
      _
    // Predicated region
    $region14: #{tpu_custom_call.1} parent=1 // pred_check
      _
    $region15: #{tpu_custom_call.1} parent=1 // pred_check_branch
      %18 = sbr.rel (0) target = $region17
    $region16: #{tpu_custom_call.1} parent=1 // pred_region
      _
    $region17: #{tpu_custom_call.1} parent=1 // pred_fallthru
      _
    // Predicated region
    $region18: #{tpu_custom_call.1} parent=1 // pred_check
      _
    $region19: #{tpu_custom_call.1} parent=1 // pred_check_branch
      %20 = sbr.rel (0) target = $region21
    $region20: #{tpu_custom_call.1} parent=1 // pred_region
      _
    $region21: #{tpu_custom_call.1} parent=1 // pred_fallthru
      _
    %v21 = vld [vmem:[%s1] sm:$0xff]
    %v22 = vld [vmem:[%s1 + $0x8] sm:$0xff]
    %v23 = vld [vmem:[%s1 + $0x10] sm:$0xff]
    %v24 = vld [vmem:[%s1 + $0x18] sm:$0xff]
    %v25 = vld [vmem:[%s0] sm:$0xff]
    %v26 = vld [vmem:[%s2] sm:$0xff]
    %v27 = vld [vmem:[%s2 + $0x8] sm:$0xff]
    %v28 = vld [vmem:[%s2 + $0x10] sm:$0xff]
    %v29 = vld [vmem:[%s2 + $0x18] sm:$0xff]
    %31 = vset.pattern.permute.xlu0 0
    %32 = vperm.xlu0 %31, %v26
    %v33 = vpop.permute.xlu0 %32
    %36 = vset.pattern.permute.xlu0 0
    %37 = vperm.xlu0 %36, %v27
    %v38 = vpop.permute.xlu0 %37
    %41 = vset.pattern.permute.xlu0 0
    %42 = vperm.xlu0 %41, %v28
    %v43 = vpop.permute.xlu0 %42
    %46 = vset.pattern.permute.xlu0 0
    %47 = vperm.xlu0 %46, %v29
    %v48 = vpop.permute.xlu0 %47
    %vm50 = vcmask 64512
    %v52 = vsel %vm50, %v21, 0
    %v55 = vsel %vm50, %v22, 0
    %v58 = vsel %vm50, %v23, 0
    %v61 = vsel %vm50, %v24, 0
    %63 = vmatprep.subr.mxu0 0.0
    %64 = vmatpush1.msra.mxu0 %v25
    %65 = vmatprep.subr.mxu0 0.0
    %66 = vmatpush1.msra.mxu0 0.0
    %67 = vmatprep.subr.mxu0 0.0
    %68 = vmatpush1.msra.mxu0 0.0
    %69 = vmatprep.subr.mxu0 0.0
    %70 = vmatpush1.msra.mxu0 0.0
    %71 = vmatprep.subr.mxu0 0.0
    %72 = vmatpush1.msra.mxu0 0.0
    %73 = vmatprep.subr.mxu0 0.0
    %74 = vmatpush1.msra.mxu0 0.0
    %75 = vmatprep.subr.mxu0 0.0
    %76 = vmatpush1.msra.mxu0 0.0
    %77 = vmatprep.subr.mxu0 0.0
    %78 = vmatpush1.msra.mxu0 0.0
    %79 = vmatprep.subr.mxu0 0.0
    %80 = vmatpush1.msra.mxu0 0.0
    %81 = vmatprep.subr.mxu0 0.0
    %82 = vmatpush1.msra.mxu0 0.0
    %83 = vmatprep.subr.mxu0 0.0
    %84 = vmatpush1.msra.mxu0 0.0
    %85 = vmatprep.subr.mxu0 0.0
    %86 = vmatpush1.msra.mxu0 0.0
    %87 = vmatprep.subr.mxu0 0.0
    %88 = vmatpush1.msra.mxu0 0.0
    %89 = vmatprep.subr.mxu0 0.0
    %90 = vmatpush1.msra.mxu0 0.0
    %91 = vmatprep.subr.mxu0 0.0
    %92 = vmatpush1.msra.mxu0 0.0
    %93 = vmatprep.subr.mxu0 0.0
    %94 = vmatpush1.msra.mxu0 0.0
    %95 = vmatprep.subr.mxu0 0.0
    %96 = vmatpush1.msra.mxu0 0.0
    %97 = vmatprep.subr.mxu0 0.0
    %98 = vmatpush1.msra.mxu0 0.0
    %99 = vmatprep.subr.mxu0 0.0
    %100 = vmatpush1.msra.mxu0 0.0
    %101 = vmatprep.subr.mxu0 0.0
    %102 = vmatpush1.msra.mxu0 0.0
    %103 = vmatprep.subr.mxu0 0.0
    %104 = vmatpush1.msra.mxu0 0.0
    %105 = vmatprep.subr.mxu0 0.0
    %106 = vmatpush1.msra.mxu0 0.0
    %107 = vmatprep.subr.mxu0 0.0
    %108 = vmatpush1.msra.mxu0 0.0
    %109 = vmatprep.subr.mxu0 0.0
    %110 = vmatpush1.msra.mxu0 0.0
    %111 = vmatprep.subr.mxu0 0.0
    %112 = vmatpush1.msra.mxu0 0.0
    %113 = vmatprep.subr.mxu0 0.0
    %114 = vmatpush1.msra.mxu0 0.0
    %115 = vmatprep.subr.mxu0 0.0
    %116 = vmatpush1.msra.mxu0 0.0
    %117 = vmatprep.subr.mxu0 0.0
    %118 = vmatpush1.msra.mxu0 0.0
    %119 = vmatprep.subr.mxu0 0.0
    %120 = vmatpush1.msra.mxu0 0.0
    %121 = vmatprep.subr.mxu0 0.0
    %122 = vmatpush1.msra.mxu0 0.0
    %123 = vmatprep.subr.mxu0 0.0
    %124 = vmatpush1.msra.mxu0 0.0
    %125 = vmatprep.subr.mxu0 0.0
    %126 = vmatpush1.msra.mxu0 0.0
    %127 = vmatprep.mubr.f32.mxu0 0.0
    %128 = vmatmul.mubr.f32.gmra.mrb[0].mxu0 %v52
    %v129 = vpop.f32.mrb[0].mxu0
    %v130 = vadd.f32 %v33, %v129
    %v131 = vpop.f32.mrb[0].mxu0
    %132 = vmatprep.mubr.f32.mxu0 0.0
    %133 = vmatmul.mubr.f32.gmra.mrb[0].mxu0 %v55
    %v134 = vpop.f32.mrb[0].mxu0
    %v135 = vadd.f32 %v38, %v134
    %v136 = vpop.f32.mrb[0].mxu0
    %137 = vmatprep.mubr.f32.mxu0 0.0
    %138 = vmatmul.mubr.f32.gmra.mrb[0].mxu0 %v58
    %v139 = vpop.f32.mrb[0].mxu0
    %v140 = vadd.f32 %v43, %v139
    %v141 = vpop.f32.mrb[0].mxu0
    %142 = vmatprep.mubr.f32.mxu0 0.0
    %143 = vmatmul.mubr.f32.gmra.mrb[0].mxu0 %v61
    %v144 = vpop.f32.mrb[0].mxu0
    %v145 = vadd.f32 %v48, %v144
    %v146 = vpop.f32.mrb[0].mxu0
    %147 = vdwg.mxu0
    %v148 = vmul.f32 %v130, 0.5
    %v149 = vmul.f32 %v135, 0.5
    %v150 = vmul.f32 %v140, 0.5
    %v151 = vmul.f32 %v145, 0.5
    %v152 = vmul.f32 %v130, 0.70710677
    %v153 = vmul.f32 %v135, 0.70710677
    %v154 = vmul.f32 %v140, 0.70710677
    %v155 = vmul.f32 %v145, 0.70710677
    %v156 = verf.f32.pop %v152
    %v157 = verf.f32.pop %v153
    %v158 = verf.f32.pop %v154
    %v159 = verf.f32.pop %v155
    %v160 = vadd.f32 %v156, 1.0
    %v161 = vadd.f32 %v157, 1.0
    %v162 = vadd.f32 %v158, 1.0
    %v163 = vadd.f32 %v159, 1.0
    %v164 = vmul.f32 %v148, %v160
    %v165 = vmul.f32 %v149, %v161
    %v166 = vmul.f32 %v150, %v162
    %v167 = vmul.f32 %v151, %v163
    %v168 = vld [vmem:[%s3] sm:$0xff]
    %v169 = vld [vmem:[%s4] sm:$0xff]
    %171 = vset.pattern.permute.xlu0 0
    %172 = vperm.xlu0 %171, %v169
    %v173 = vpop.permute.xlu0 %172
    %vm175 = vcmask 261120
    %v177 = vsel %vm175, %v168, 0
    %179 = vmatprep.subr.mxu0 0.0
    %180 = vmatpush1.msra.mxu0 %v164
    %181 = vmatprep.subr.mxu0 0.0
    %182 = vmatpush1.msra.mxu0 %v165
    %183 = vmatprep.subr.mxu0 0.0
    %184 = vmatpush1.msra.mxu0 %v166
    %185 = vmatprep.subr.mxu0 0.0
    %186 = vmatpush1.msra.mxu0 %v167
    %187 = vmatprep.subr.mxu0 0.0
    %188 = vmatpush1.msra.mxu0 0.0
    %189 = vmatprep.subr.mxu0 0.0
    %190 = vmatpush1.msra.mxu0 0.0
    %191 = vmatprep.subr.mxu0 0.0
    %192 = vmatpush1.msra.mxu0 0.0
    %193 = vmatprep.subr.mxu0 0.0
    %194 = vmatpush1.msra.mxu0 0.0
    %195 = vmatprep.subr.mxu0 0.0
    %196 = vmatpush1.msra.mxu0 0.0
    %197 = vmatprep.subr.mxu0 0.0
    %198 = vmatpush1.msra.mxu0 0.0
    %199 = vmatprep.subr.mxu0 0.0
    %200 = vmatpush1.msra.mxu0 0.0
    %201 = vmatprep.subr.mxu0 0.0
    %202 = vmatpush1.msra.mxu0 0.0
    %203 = vmatprep.subr.mxu0 0.0
    %204 = vmatpush1.msra.mxu0 0.0
    %205 = vmatprep.subr.mxu0 0.0
    %206 = vmatpush1.msra.mxu0 0.0
    %207 = vmatprep.subr.mxu0 0.0
    %208 = vmatpush1.msra.mxu0 0.0
    %209 = vmatprep.subr.mxu0 0.0
    %210 = vmatpush1.msra.mxu0 0.0
    %211 = vmatprep.subr.mxu0 0.0
    %212 = vmatpush1.msra.mxu0 0.0
    %213 = vmatprep.subr.mxu0 0.0
    %214 = vmatpush1.msra.mxu0 0.0
    %215 = vmatprep.subr.mxu0 0.0
    %216 = vmatpush1.msra.mxu0 0.0
    %217 = vmatprep.subr.mxu0 0.0
    %218 = vmatpush1.msra.mxu0 0.0
    %219 = vmatprep.subr.mxu0 0.0
    %220 = vmatpush1.msra.mxu0 0.0
    %221 = vmatprep.subr.mxu0 0.0
    %222 = vmatpush1.msra.mxu0 0.0
    %223 = vmatprep.subr.mxu0 0.0
    %224 = vmatpush1.msra.mxu0 0.0
    %225 = vmatprep.subr.mxu0 0.0
    %226 = vmatpush1.msra.mxu0 0.0
    %227 = vmatprep.subr.mxu0 0.0
    %228 = vmatpush1.msra.mxu0 0.0
    %229 = vmatprep.subr.mxu0 0.0
    %230 = vmatpush1.msra.mxu0 0.0
    %231 = vmatprep.subr.mxu0 0.0
    %232 = vmatpush1.msra.mxu0 0.0
    %233 = vmatprep.subr.mxu0 0.0
    %234 = vmatpush1.msra.mxu0 0.0
    %235 = vmatprep.subr.mxu0 0.0
    %236 = vmatpush1.msra.mxu0 0.0
    %237 = vmatprep.subr.mxu0 0.0
    %238 = vmatpush1.msra.mxu0 0.0
    %239 = vmatprep.subr.mxu0 0.0
    %240 = vmatpush1.msra.mxu0 0.0
    %241 = vmatprep.subr.mxu0 0.0
    %242 = vmatpush1.msra.mxu0 0.0
    %243 = vmatprep.mubr.f32.mxu0 0.0
    %244 = vmatmul.mubr.f32.gmra.mrb[0].mxu0 %v177
    %v245 = vpop.f32.mrb[0].mxu0
    %v246 = vadd.f32 %v173, %v245
    %v247 = vpop.f32.mrb[0].mxu0
    %248 = vdwg.mxu0
    %249 = vst [vmem:[#allocation2] sm:$0xff] %v246
    // Predicated region
    $region22: #{tpu_custom_call.1} parent=1 // pred_check
      _
    $region23: #{tpu_custom_call.1} parent=1 // pred_check_branch
      %251 = sbr.rel (0) target = $region25
    $region24: #{tpu_custom_call.1} parent=1 // pred_region
      %s253 = ssub.s32 128, 128
      %254 = vsyncadd [#allocation3], %s253
      %s256 = sshll.u32 [#allocation2], 4
      %s257 = int_to_ptr.vmem [resolvable:$true] %s256
      %259 = dma.vmem_to_hbm [thread:$0]  %s257, 128, %s5, [#allocation3]
    $region25: #{tpu_custom_call.1} parent=1 // pred_fallthru
      _
    // Predicated region
    $region26: #{tpu_custom_call.1} parent=1 // pred_check
      _
    $region27: #{tpu_custom_call.1} parent=1 // pred_check_branch
      %261 = sbr.rel (0) target = $region29
    $region28: #{tpu_custom_call.1} parent=1 // pred_region
      %262 = dma.done [#allocation3], 128
    $region29: #{tpu_custom_call.1} parent=1 // pred_fallthru
      _
    %263 = vsyncpa [#allocation3], 1

</llo_original>
